<compile_context>
chip_gen: v5e
topology: v5e:2x2
jax: 0.10.0
libtpu: 0.0.40
codegen_flags: <defaults>
</compile_context>

<pallas_src>
import functools

import jax
import jax.numpy as jnp
from jax.experimental import pallas as pl
from jax.experimental.pallas import tpu as pltpu


DIM1 = 256
DIM2 = 128
FINALDIM = 128
BN_EPS = 1e-5
NEG_SLOPE = 0.01  # F.leaky_relu default


def _round_up(x, m):
    return ((x + m - 1) // m) * m


def _leaky_relu(x):
    # vmul + vmax instead of cmp + select + mul.
    return jnp.maximum(x, NEG_SLOPE * x)


def _fold_bn(gamma, beta, running_mean, running_var, eps=BN_EPS):
    """Return per-feature (scale, shift) so eval-mode bn(h) == h*scale + shift."""
    scale = gamma / jnp.sqrt(running_var + eps)
    shift = beta - running_mean * scale
    return scale, shift


def prepare_params(params, compute_dtype=jnp.bfloat16):
    """One-time prep (outside the jitted forward): fold BN into the following Linear,
    reshape biases to [1, dim] f32, and cast MXU weights to compute_dtype (bf16 default)."""
    s1, t1 = _fold_bn(*params["bn"])    # after hidden   (256,)
    s2, t2 = _fold_bn(*params["bn1"])   # after hidden1  (128,)
    s3, t3 = _fold_bn(*params["bn2"])   # after hidden2  (128,)

    w1, b1 = params["w1"], params["b1"]
    w2, b2 = params["w2"], params["b2"]
    w3, b3 = params["w3"], params["b3"]
    wp, bp = params["wp"], params["bp"]

    w2f = s1[:, None] * w2
    b2f = t1 @ w2 + b2
    w3a = s2[:, None] * w3
    b3a = t2 @ w3 + b3
    w3b = s3[:, None] * w3
    b3b = t3 @ w3 + b3
    wpf = (s3 * wp[:, 0])[None, :]      # [1, FINALDIM] row for the lane reduce
    bpf = (t3 @ wp + bp)[None, :]       # [1, 1]

    cdt = compute_dtype
    row = lambda v: jnp.asarray(v, jnp.float32).reshape(1, -1)
    return {
        "w1": w1.astype(cdt),  "b1": row(b1),
        "w2": w2f.astype(cdt), "b2": row(b2f),
        "w3a": w3a.astype(cdt), "b3a": row(b3a),
        "w3b": w3b.astype(cdt), "b3b": row(b3b),
        "wp": wpf.astype(cdt),  "bp": jnp.asarray(bpf, jnp.float32),
    }


def _disc_kernel(x_ref,
                 w1_ref, b1_ref,
                 w2_ref, b2_ref,
                 w3a_ref, b3a_ref,
                 w3b_ref, b3b_ref,
                 wp_ref, bp_ref,
                 o_ref):
    """One batch tile of the fused MLP forward (BN already folded into weights)."""
    cdt = w1_ref.dtype  # MXU operand dtype (bf16 by default, f32 optional)

    # In-kernel cast of x (cheap VPU op, overlaps with DMA/MXU); x streams in its
    # native dtype so there is no extra HBM pass in the wrapper.
    x = x_ref[...].astype(cdt)

    # hidden: Linear(in_len -> 256) + leaky_relu   (bn folded into w2/b2)
    h = jnp.dot(x, w1_ref[...], preferred_element_type=jnp.float32)
    h = _leaky_relu(h + b1_ref[...])

    # hidden1: Linear(256 -> 128) + leaky_relu     (bn1 folded into w3a/b3a)
    h = jnp.dot(h.astype(cdt), w2_ref[...], preferred_element_type=jnp.float32)
    h = _leaky_relu(h + b2_ref[...])

    # hidden2, first pass of the `for i in range(2)` loop  (bn2 folded into w3b/b3b)
    h = jnp.dot(h.astype(cdt), w3a_ref[...], preferred_element_type=jnp.float32)
    h = _leaky_relu(h + b3a_ref[...])

    # hidden2, second pass                          (bn2 folded into wp/bp)
    h = jnp.dot(h.astype(cdt), w3b_ref[...], preferred_element_type=jnp.float32)
    h = _leaky_relu(h + b3b_ref[...])

    # predict: Linear(128 -> 1) as VPU multiply + lane reduction (avoids an N=1 MXU pass)
    wp_row = wp_ref[...].astype(jnp.float32)           # [1, 128]
    out = jnp.sum(h * wp_row, axis=-1, keepdims=True)  # [TB, 1]
    o_ref[...] = (out + bp_ref[...]).astype(o_ref.dtype)


@functools.partial(jax.jit, static_argnames=("block_b",))
def discriminator_law_forward(x, prepared, *, block_b=2048):
    """x: [B, input_length] -> [B, 1] float32 (eval-mode forward).

    `prepared` comes from prepare_params(); the jitted graph is just this pallas_call."""
    B, in_len = x.shape

    # Batch tile: big to amortize per-grid-step overhead, but capped so the grid has
    # >= 2 steps and v7x's two TensorCores both get work (no effect on v5e/v6e).
    TB = min(block_b, max(16, _round_up(pl.cdiv(B, 2), 16)))
    if TB >= B:
        TB = B  # single full-extent block (legal even when B is not a multiple of 8)
    grid = pl.cdiv(B, TB)  # ragged last block: OOB rows are masked on store

    # Explicit VMEM budget from the actual tile footprint (raises v5e's 16 MiB default,
    # stays well under v7x's 64 MiB physical for this kernel).
    w_itemsize = jnp.dtype(prepared["w1"].dtype).itemsize
    n_w = in_len * DIM1 + DIM1 * DIM2 + 2 * DIM2 * FINALDIM + FINALDIM
    n_b = DIM1 + DIM2 + 2 * FINALDIM + 1
    need = (2 * TB * in_len * x.dtype.itemsize      # x double-buffer
            + 2 * (n_w * w_itemsize + n_b * 4)       # resident weights/biases
            + 2 * TB * 4)                            # output double-buffer
    vmem_limit = int(min(110 * 2**20, max(32 * 2**20, 2 * need)))

    const = lambda i: (0, 0)
    in_specs = [
        pl.BlockSpec((TB, in_len), lambda i: (i, 0)),     # x tile (streamed, native dtype)
        pl.BlockSpec((in_len, DIM1), const),              # w1   (VMEM-resident)
        pl.BlockSpec((1, DIM1), const),                   # b1
        pl.BlockSpec((DIM1, DIM2), const),                # w2 (bn folded)
        pl.BlockSpec((1, DIM2), const),                   # b2
        pl.BlockSpec((DIM2, FINALDIM), const),            # w3 pass 1 (bn1 folded)
        pl.BlockSpec((1, FINALDIM), const),               # b3 pass 1
        pl.BlockSpec((DIM2, FINALDIM), const),            # w3 pass 2 (bn2 folded)
        pl.BlockSpec((1, FINALDIM), const),               # b3 pass 2
        pl.BlockSpec((1, FINALDIM), const),               # predict weight row (bn2 folded)
        pl.BlockSpec((1, 1), const),                      # predict bias
    ]
    out_spec = pl.BlockSpec((TB, 1), lambda i: (i, 0))

    return pl.pallas_call(
        _disc_kernel,
        out_shape=jax.ShapeDtypeStruct((B, 1), jnp.float32),
        grid=(grid,),
        in_specs=in_specs,
        out_specs=out_spec,
        compiler_params=pltpu.CompilerParams(
            dimension_semantics=("parallel",),
            vmem_limit_bytes=vmem_limit,
        ),
    )(x,
      prepared["w1"], prepared["b1"],
      prepared["w2"], prepared["b2"],
      prepared["w3a"], prepared["b3a"],
      prepared["w3b"], prepared["b3b"],
      prepared["wp"], prepared["bp"])


def init_params(key, input_length):
    """Deterministic synthetic parameters matching the PyTorch module's shapes."""
    ks = jax.random.split(key, 20)

    def lin(kw, kb, fan_in, fan_out):
        bound = 1.0 / jnp.sqrt(fan_in)
        w = jax.random.uniform(kw, (fan_in, fan_out), jnp.float32, -bound, bound)
        b = jax.random.uniform(kb, (fan_out,), jnp.float32, -bound, bound)
        return w, b

    def bn(kg, kb, km, kv, dim):
        gamma = 1.0 + 0.1 * jax.random.normal(kg, (dim,), jnp.float32)
        beta = 0.1 * jax.random.normal(kb, (dim,), jnp.float32)
        rmean = 0.1 * jax.random.normal(km, (dim,), jnp.float32)
        rvar = 1.0 + 0.1 * jax.random.uniform(kv, (dim,), jnp.float32)
        return gamma, beta, rmean, rvar

    w1, b1 = lin(ks[0], ks[1], input_length, DIM1)
    w2, b2 = lin(ks[2], ks[3], DIM1, DIM2)
    w3, b3 = lin(ks[4], ks[5], DIM2, FINALDIM)
    wp, bp = lin(ks[6], ks[7], FINALDIM, 1)

    return {
        "w1": w1, "b1": b1,
        "w2": w2, "b2": b2,
        "w3": w3, "b3": b3,
        "wp": wp, "bp": bp,
        "bn": bn(ks[8], ks[9], ks[10], ks[11], DIM1),
        "bn1": bn(ks[12], ks[13], ks[14], ks[15], DIM2),
        "bn2": bn(ks[16], ks[17], ks[18], ks[19], FINALDIM),
    }


def reference_forward(x, params):
    """Plain-JAX reference of the same eval-mode forward (unfolded BN)."""
    def bn_apply(h, bnp):
        s, t = _fold_bn(*bnp)
        return h * s + t

    h = _leaky_relu(x @ params["w1"] + params["b1"])
    h = bn_apply(h, params["bn"])
    h = _leaky_relu(h @ params["w2"] + params["b2"])
    h = bn_apply(h, params["bn1"])
    for _ in range(2):
        h = _leaky_relu(h @ params["w3"] + params["b3"])
        h = bn_apply(h, params["bn2"])
    return h @ params["wp"] + params["bp"]


if __name__ == "__main__":
    key = jax.random.PRNGKey(0)
    k_x, k_x2, k_p = jax.random.split(key, 3)

    input_length = 64  # small, consistent with a tabular "law" feature vector
    params = init_params(k_p, input_length)

    # ---- f32 MXU path: exact check against the plain-JAX reference ----
    prep_f32 = prepare_params(params, compute_dtype=jnp.float32)

    # Small batch (single grid step, full-extent block).
    x_small = jax.random.normal(k_x, (8, input_length), jnp.float32)
    out_small = jax.block_until_ready(discriminator_law_forward(x_small, prep_f32))
    ref_small = reference_forward(x_small, params)
    assert out_small.shape == (8, 1), out_small.shape
    assert jnp.allclose(out_small, ref_small, atol=1e-3, rtol=1e-3)

    # Larger, non-tile-multiple batch exercising the batch grid (grid=(2,), ragged tail).
    x_big = jax.random.normal(k_x2, (1000, input_length), jnp.float32)
    out_big = jax.block_until_ready(discriminator_law_forward(x_big, prep_f32))
    ref_big = reference_forward(x_big, params)
    assert out_big.shape == (1000, 1), out_big.shape
    assert jnp.allclose(out_big, ref_big, atol=1e-3, rtol=1e-3)

    # ---- bf16 MXU default: tolerance check against the f32 reference ----
    prep_bf16 = prepare_params(params)  # compute_dtype=jnp.bfloat16 (default)
    out_bf16 = jax.block_until_ready(discriminator_law_forward(x_big, prep_bf16))
    assert out_bf16.shape == (1000, 1), out_bf16.shape
    err = float(jnp.max(jnp.abs(out_bf16 - ref_big)))
    scale = float(jnp.max(jnp.abs(ref_big)))
    assert err <= 0.05 * scale + 1e-3, (err, scale)

    print("KERNEL_OK")
</pallas_src>

<mosaic_0001>
module attributes {stable_mosaic.version = 11 : i64} {
  func.func @_disc_kernel(%arg0: i32, %arg1: memref<8x64xf32, #tpu.memory_space<vmem>>, %arg2: memref<64x256xf32, #tpu.memory_space<vmem>>, %arg3: memref<1x256xf32, #tpu.memory_space<vmem>>, %arg4: memref<256x128xf32, #tpu.memory_space<vmem>>, %arg5: memref<1x128xf32, #tpu.memory_space<vmem>>, %arg6: memref<128x128xf32, #tpu.memory_space<vmem>>, %arg7: memref<1x128xf32, #tpu.memory_space<vmem>>, %arg8: memref<128x128xf32, #tpu.memory_space<vmem>>, %arg9: memref<1x128xf32, #tpu.memory_space<vmem>>, %arg10: memref<1x128xf32, #tpu.memory_space<vmem>>, %arg11: memref<1x1xf32, #tpu.memory_space<vmem>>, %arg12: memref<8x1xf32, #tpu.memory_space<vmem>>) attributes {dimension_semantics = [#tpu.dimension_semantics<parallel>], iteration_bounds = array<i64: 1>, scalar_prefetch = 0 : i64, scratch_operands = 0 : i64, tpu.core_type = #tpu.core_type<tc>, window_params = [{transform_indices = @transform_0, window_bounds = array<i64: 8, 64>}, {pipeline_mode = #tpu.pipeline_mode<synchronous>, transform_indices = @transform_1, window_bounds = array<i64: 64, 256>}, {pipeline_mode = #tpu.pipeline_mode<synchronous>, transform_indices = @transform_2, window_bounds = array<i64: 1, 256>}, {pipeline_mode = #tpu.pipeline_mode<synchronous>, transform_indices = @transform_3, window_bounds = array<i64: 256, 128>}, {pipeline_mode = #tpu.pipeline_mode<synchronous>, transform_indices = @transform_4, window_bounds = array<i64: 1, 128>}, {pipeline_mode = #tpu.pipeline_mode<synchronous>, transform_indices = @transform_5, window_bounds = array<i64: 128, 128>}, {pipeline_mode = #tpu.pipeline_mode<synchronous>, transform_indices = @transform_6, window_bounds = array<i64: 1, 128>}, {pipeline_mode = #tpu.pipeline_mode<synchronous>, transform_indices = @transform_7, window_bounds = array<i64: 128, 128>}, {pipeline_mode = #tpu.pipeline_mode<synchronous>, transform_indices = @transform_8, window_bounds = array<i64: 1, 128>}, {pipeline_mode = #tpu.pipeline_mode<synchronous>, transform_indices = @transform_9, window_bounds = array<i64: 1, 128>}, {pipeline_mode = #tpu.pipeline_mode<synchronous>, transform_indices = @transform_10, window_bounds = array<i64: 1, 1>}, {transform_indices = @transform_11, window_bounds = array<i64: 8, 1>}]} {
    %c0 = arith.constant 0 : index
    %c0_0 = arith.constant 0 : index
    %0 = vector.load %arg1[%c0, %c0_0] : memref<8x64xf32, #tpu.memory_space<vmem>>, vector<8x64xf32>
    %c0_1 = arith.constant 0 : index
    %c0_2 = arith.constant 0 : index
    %1 = vector.load %arg2[%c0_1, %c0_2] : memref<64x256xf32, #tpu.memory_space<vmem>>, vector<64x256xf32>
    %cst = arith.constant dense<0.000000e+00> : vector<8x256xf32>
    %2 = tpu.matmul %0, %1, %cst {dimension_numbers = #tpu.dot_dimension_numbers<[1], [0], [0], [1], [0, 0, 1, 1], [], []>} : vector<8x64xf32>, vector<64x256xf32>, vector<8x256xf32> -> vector<8x256xf32>
    %c0_3 = arith.constant 0 : index
    %c0_4 = arith.constant 0 : index
    %3 = vector.load %arg3[%c0_3, %c0_4] : memref<1x256xf32, #tpu.memory_space<vmem>>, vector<1x256xf32>
    %4 = vector.broadcast %3 : vector<1x256xf32> to vector<8x256xf32>
    %5 = arith.addf %2, %4 : vector<8x256xf32>
    %cst_5 = arith.constant 0.00999999977 : f32
    %6 = vector.broadcast %cst_5 : f32 to vector<8x256xf32>
    %7 = arith.mulf %6, %5 : vector<8x256xf32>
    %8 = arith.maximumf %5, %7 : vector<8x256xf32>
    %c0_6 = arith.constant 0 : index
    %c0_7 = arith.constant 0 : index
    %9 = vector.load %arg4[%c0_6, %c0_7] : memref<256x128xf32, #tpu.memory_space<vmem>>, vector<256x128xf32>
    %cst_8 = arith.constant dense<0.000000e+00> : vector<8x128xf32>
    %10 = tpu.matmul %8, %9, %cst_8 {dimension_numbers = #tpu.dot_dimension_numbers<[1], [0], [0], [1], [0, 0, 1, 1], [], []>} : vector<8x256xf32>, vector<256x128xf32>, vector<8x128xf32> -> vector<8x128xf32>
    %c0_9 = arith.constant 0 : index
    %c0_10 = arith.constant 0 : index
    %11 = vector.load %arg5[%c0_9, %c0_10] : memref<1x128xf32, #tpu.memory_space<vmem>>, vector<1x128xf32>
    %12 = vector.broadcast %11 : vector<1x128xf32> to vector<8x128xf32>
    %13 = arith.addf %10, %12 : vector<8x128xf32>
    %cst_11 = arith.constant 0.00999999977 : f32
    %14 = vector.broadcast %cst_11 : f32 to vector<8x128xf32>
    %15 = arith.mulf %14, %13 : vector<8x128xf32>
    %16 = arith.maximumf %13, %15 : vector<8x128xf32>
    %c0_12 = arith.constant 0 : index
    %c0_13 = arith.constant 0 : index
    %17 = vector.load %arg6[%c0_12, %c0_13] : memref<128x128xf32, #tpu.memory_space<vmem>>, vector<128x128xf32>
    %cst_14 = arith.constant dense<0.000000e+00> : vector<8x128xf32>
    %18 = tpu.matmul %16, %17, %cst_14 {dimension_numbers = #tpu.dot_dimension_numbers<[1], [0], [0], [1], [0, 0, 1, 1], [], []>} : vector<8x128xf32>, vector<128x128xf32>, vector<8x128xf32> -> vector<8x128xf32>
    %c0_15 = arith.constant 0 : index
    %c0_16 = arith.constant 0 : index
    %19 = vector.load %arg7[%c0_15, %c0_16] : memref<1x128xf32, #tpu.memory_space<vmem>>, vector<1x128xf32>
    %20 = vector.broadcast %19 : vector<1x128xf32> to vector<8x128xf32>
    %21 = arith.addf %18, %20 : vector<8x128xf32>
    %cst_17 = arith.constant 0.00999999977 : f32
    %22 = vector.broadcast %cst_17 : f32 to vector<8x128xf32>
    %23 = arith.mulf %22, %21 : vector<8x128xf32>
    %24 = arith.maximumf %21, %23 : vector<8x128xf32>
    %c0_18 = arith.constant 0 : index
    %c0_19 = arith.constant 0 : index
    %25 = vector.load %arg8[%c0_18, %c0_19] : memref<128x128xf32, #tpu.memory_space<vmem>>, vector<128x128xf32>
    %cst_20 = arith.constant dense<0.000000e+00> : vector<8x128xf32>
    %26 = tpu.matmul %24, %25, %cst_20 {dimension_numbers = #tpu.dot_dimension_numbers<[1], [0], [0], [1], [0, 0, 1, 1], [], []>} : vector<8x128xf32>, vector<128x128xf32>, vector<8x128xf32> -> vector<8x128xf32>
    %c0_21 = arith.constant 0 : index
    %c0_22 = arith.constant 0 : index
    %27 = vector.load %arg9[%c0_21, %c0_22] : memref<1x128xf32, #tpu.memory_space<vmem>>, vector<1x128xf32>
    %28 = vector.broadcast %27 : vector<1x128xf32> to vector<8x128xf32>
    %29 = arith.addf %26, %28 : vector<8x128xf32>
    %cst_23 = arith.constant 0.00999999977 : f32
    %30 = vector.broadcast %cst_23 : f32 to vector<8x128xf32>
    %31 = arith.mulf %30, %29 : vector<8x128xf32>
    %32 = arith.maximumf %29, %31 : vector<8x128xf32>
    %c0_24 = arith.constant 0 : index
    %c0_25 = arith.constant 0 : index
    %33 = vector.load %arg10[%c0_24, %c0_25] : memref<1x128xf32, #tpu.memory_space<vmem>>, vector<1x128xf32>
    %34 = vector.broadcast %33 : vector<1x128xf32> to vector<8x128xf32>
    %35 = arith.mulf %32, %34 : vector<8x128xf32>
    %cst_26 = arith.constant dense<0.000000e+00> : vector<8xf32>
    %36 = vector.multi_reduction <add>, %35, %cst_26 [1] : vector<8x128xf32> to vector<8xf32>
    %37 = vector.shape_cast %36 : vector<8xf32> to vector<8x1xf32>
    %c0_27 = arith.constant 0 : index
    %c0_28 = arith.constant 0 : index
    %38 = vector.load %arg11[%c0_27, %c0_28] : memref<1x1xf32, #tpu.memory_space<vmem>>, vector<1x1xf32>
    %39 = vector.broadcast %38 : vector<1x1xf32> to vector<8x1xf32>
    %40 = arith.addf %37, %39 : vector<8x1xf32>
    %c0_29 = arith.constant 0 : index
    %c0_30 = arith.constant 0 : index
    %41 = vector.load %arg12[%c0_29, %c0_30] : memref<8x1xf32, #tpu.memory_space<vmem>>, vector<8x1xf32>
    tpu.vector_store %arg12[%c0_29, %c0_30], %40 {strides = array<i32>} : memref<8x1xf32, #tpu.memory_space<vmem>>, vector<8x1xf32>,
    return
  }
  func.func @transform_0(%arg0: i32) -> (i32, i32) {
    %c0_i32 = arith.constant 0 : i32
    %c0_i32_0 = arith.constant 0 : i32
    return %arg0, %c0_i32 : i32, i32
  }
  func.func @transform_1(%arg0: i32) -> (i32, i32) {
    %c0_i32 = arith.constant 0 : i32
    %c0_i32_0 = arith.constant 0 : i32
    %c0_i32_1 = arith.constant 0 : i32
    return %c0_i32, %c0_i32_0 : i32, i32
  }
  func.func @transform_2(%arg0: i32) -> (i32, i32) {
    %c0_i32 = arith.constant 0 : i32
    %c0_i32_0 = arith.constant 0 : i32
    %c0_i32_1 = arith.constant 0 : i32
    return %c0_i32, %c0_i32_0 : i32, i32
  }
  func.func @transform_3(%arg0: i32) -> (i32, i32) {
    %c0_i32 = arith.constant 0 : i32
    %c0_i32_0 = arith.constant 0 : i32
    %c0_i32_1 = arith.constant 0 : i32
    return %c0_i32, %c0_i32_0 : i32, i32
  }
  func.func @transform_4(%arg0: i32) -> (i32, i32) {
    %c0_i32 = arith.constant 0 : i32
    %c0_i32_0 = arith.constant 0 : i32
    %c0_i32_1 = arith.constant 0 : i32
    return %c0_i32, %c0_i32_0 : i32, i32
  }
  func.func @transform_5(%arg0: i32) -> (i32, i32) {
    %c0_i32 = arith.constant 0 : i32
    %c0_i32_0 = arith.constant 0 : i32
    %c0_i32_1 = arith.constant 0 : i32
    return %c0_i32, %c0_i32_0 : i32, i32
  }
  func.func @transform_6(%arg0: i32) -> (i32, i32) {
    %c0_i32 = arith.constant 0 : i32
    %c0_i32_0 = arith.constant 0 : i32
    %c0_i32_1 = arith.constant 0 : i32
    return %c0_i32, %c0_i32_0 : i32, i32
  }
  func.func @transform_7(%arg0: i32) -> (i32, i32) {
    %c0_i32 = arith.constant 0 : i32
    %c0_i32_0 = arith.constant 0 : i32
    %c0_i32_1 = arith.constant 0 : i32
    return %c0_i32, %c0_i32_0 : i32, i32
  }
  func.func @transform_8(%arg0: i32) -> (i32, i32) {
    %c0_i32 = arith.constant 0 : i32
    %c0_i32_0 = arith.constant 0 : i32
    %c0_i32_1 = arith.constant 0 : i32
    return %c0_i32, %c0_i32_0 : i32, i32
  }
  func.func @transform_9(%arg0: i32) -> (i32, i32) {
    %c0_i32 = arith.constant 0 : i32
    %c0_i32_0 = arith.constant 0 : i32
    %c0_i32_1 = arith.constant 0 : i32
    return %c0_i32, %c0_i32_0 : i32, i32
  }
  func.func @transform_10(%arg0: i32) -> (i32, i32) {
    %c0_i32 = arith.constant 0 : i32
    %c0_i32_0 = arith.constant 0 : i32
    %c0_i32_1 = arith.constant 0 : i32
    return %c0_i32, %c0_i32_0 : i32, i32
  }
  func.func @transform_11(%arg0: i32) -> (i32, i32) {
    %c0_i32 = arith.constant 0 : i32
    %c0_i32_0 = arith.constant 0 : i32
    return %arg0, %c0_i32 : i32, i32
  }
}

</mosaic_0001>

<llo_original>
// kernel: discriminator_law_forward.1
$region0: #{discriminator_law_forward.1}
  #allocation0 [shape = 'u32[]', space=smem, size = 0x4, offset = 0x4, fixed_abs, tag = 'smem constant byte address 0x4 - core index']
  #allocation1 [shape = 'u32[72,128]{1,0:T(1,128)}', space=vmem, size = 0x9000, scoped, tag = 'internal scratch']
  #allocation2 [shape = 'f32[1,1]{1,0:T(1,128)S(1)}', space=vmem, size = 0x200, scoped, tag = 'scoped memory for discriminator_law_forward.1']
  %s0 = inlined_call_operand.hbm [shape: f32[8,64], index: 0, kind: input, shape index: {}]
  %s1 = inlined_call_operand.hbm [shape: f32[64,256], index: 1, kind: input, shape index: {}]
  %s2 = inlined_call_operand.vmem [shape: f32[1,256], index: 2, kind: input, shape index: {}]
  %s3 = inlined_call_operand.hbm [shape: f32[256,128], index: 3, kind: input, shape index: {}]
  %s4 = inlined_call_operand.vmem [shape: f32[1,128], index: 4, kind: input, shape index: {}]
  %s5 = inlined_call_operand.hbm [shape: f32[128,128], index: 5, kind: input, shape index: {}]
  %s6 = inlined_call_operand.vmem [shape: f32[1,128], index: 6, kind: input, shape index: {}]
  %s7 = inlined_call_operand.hbm [shape: f32[128,128], index: 7, kind: input, shape index: {}]
  %s8 = inlined_call_operand.vmem [shape: f32[1,128], index: 8, kind: input, shape index: {}]
  %s9 = inlined_call_operand.vmem [shape: f32[1,128], index: 9, kind: input, shape index: {}]
  %s10 = inlined_call_operand.<no memory space> [shape: f32[1,1], index: 10, kind: input, shape index: {}]
  %s11 = inlined_call_operand.vmem [shape: f32[8,1], index: 11, kind: output, shape index: {}]
  %s12 = sld [smem:[#allocation0]]
  $region74: #{discriminator_law_forward.1} parent=0
    _
  %s14 = ssub.s32 1, %s12
  %s15 = scalar_select 0, %s14, %s12
  %v16 = vstv %s10
  %17 = vst [vmem:[#allocation2] sm:$0x1] %v16
  $region1: #{discriminator_law_forward.1} parent=0
    #allocation3 [shape = 'u8[4096]{0}', space=vmem, size = 0x1000, scoped, tag = 'input window, operand 0, single buffered']
    #allocation4 [shape = 's32[1]{0}', space=sflag, size = 0x4, scoped, tag = 'scoped memory for discriminator_law_forward.1']
    #allocation5 [shape = 'u8[65536]{0}', space=vmem, size = 0x10000, scoped, tag = 'input window, operand 1, single buffered']
    #allocation6 [shape = 's32[1]{0}', space=sflag, size = 0x4, scoped, tag = 'scoped memory for discriminator_law_forward.1']
    #allocation7 [shape = 'u8[131072]{0}', space=vmem, size = 0x20000, scoped, tag = 'input window, operand 3, single buffered']
    #allocation8 [shape = 'u8[65536]{0}', space=vmem, size = 0x10000, scoped, tag = 'input window, operand 5, single buffered']
    #allocation9 [shape = 's32[1]{0}', space=sflag, size = 0x4, scoped, tag = 'scoped memory for discriminator_law_forward.1']
    #allocation10 [shape = 'u8[65536]{0}', space=vmem, size = 0x10000, scoped, tag = 'input window, operand 7, single buffered']
    %18 = vsyncpa [#allocation4], 0
    %19 = vsyncpa [#allocation6], 0
    %20 = vsyncpa [#allocation9], 0
    // Predicated region
    $region2: #{discriminator_law_forward.1} parent=1 // pred_check
      _
    $region3: #{discriminator_law_forward.1} parent=1 // pred_check_branch
      %22 = sbr.rel (0) target = $region5
    $region4: #{discriminator_law_forward.1} parent=1 // pred_region
      %24 = vsyncadd [#allocation4], 0
      %s26 = sshll.u32 %s0, 4
      %s27 = int_to_ptr.hbm [resolvable:$true] %s26
      %s28 = sshll.u32 [#allocation3], 4
      %s29 = int_to_ptr.vmem [resolvable:$true] %s28
      %31 = dma.hbm_to_vmem [thread:$0]  %s27, 128, %s29, [#allocation4]
    $region5: #{discriminator_law_forward.1} parent=1 // pred_fallthru
      _
    // Predicated region
    $region6: #{discriminator_law_forward.1} parent=1 // pred_check
      _
    $region7: #{discriminator_law_forward.1} parent=1 // pred_check_branch
      %33 = sbr.rel (0) target = $region9
    $region8: #{discriminator_law_forward.1} parent=1 // pred_region
      %35 = vsyncadd [#allocation6], 0
      %s36 = sshll.u32 %s1, 4
      %s37 = int_to_ptr.hbm [resolvable:$true] %s36
      %s38 = sshll.u32 [#allocation5], 4
      %s39 = int_to_ptr.vmem [resolvable:$true] %s38
      %44 = dma.hbm_to_vmem [thread:$0]  %s37, 2048, %s39, [#allocation6], 256, 256, 16
    $region9: #{discriminator_law_forward.1} parent=1 // pred_fallthru
      _
    // Predicated region
    $region10: #{discriminator_law_forward.1} parent=1 // pred_check
      _
    $region11: #{discriminator_law_forward.1} parent=1 // pred_check_branch
      %46 = sbr.rel (0) target = $region13
    $region12: #{discriminator_law_forward.1} parent=1 // pred_region
      _
    $region13: #{discriminator_law_forward.1} parent=1 // pred_fallthru
      _
    // Predicated region
    $region14: #{discriminator_law_forward.1} parent=1 // pred_check
      _
    $region15: #{discriminator_law_forward.1} parent=1 // pred_check_branch
      %48 = sbr.rel (0) target = $region17
    $region16: #{discriminator_law_forward.1} parent=1 // pred_region
      %50 = vsyncadd [#allocation6], 0
      %s51 = sshll.u32 %s3, 4
      %s52 = int_to_ptr.hbm [resolvable:$true] %s51
      %s53 = sshll.u32 [#allocation7], 4
      %s54 = int_to_ptr.vmem [resolvable:$true] %s53
      %59 = dma.hbm_to_vmem [thread:$0]  %s52, 4096, %s54, [#allocation6], 128, 128, 8
    $region17: #{discriminator_law_forward.1} parent=1 // pred_fallthru
      _
    // Predicated region
    $region18: #{discriminator_law_forward.1} parent=1 // pred_check
      _
    $region19: #{discriminator_law_forward.1} parent=1 // pred_check_branch
      %61 = sbr.rel (0) target = $region21
    $region20: #{discriminator_law_forward.1} parent=1 // pred_region
      _
    $region21: #{discriminator_law_forward.1} parent=1 // pred_fallthru
      _
    // Predicated region
    $region22: #{discriminator_law_forward.1} parent=1 // pred_check
      _
    $region23: #{discriminator_law_forward.1} parent=1 // pred_check_branch
      %63 = sbr.rel (0) target = $region25
    $region24: #{discriminator_law_forward.1} parent=1 // pred_region
      %65 = vsyncadd [#allocation9], 0
      %s66 = sshll.u32 %s5, 4
      %s67 = int_to_ptr.hbm [resolvable:$true] %s66
      %s68 = sshll.u32 [#allocation8], 4
      %s69 = int_to_ptr.vmem [resolvable:$true] %s68
      %74 = dma.hbm_to_vmem [thread:$0]  %s67, 2048, %s69, [#allocation9], 128, 128, 8
    $region25: #{discriminator_law_forward.1} parent=1 // pred_fallthru
      _
    // Predicated region
    $region26: #{discriminator_law_forward.1} parent=1 // pred_check
      _
    $region27: #{discriminator_law_forward.1} parent=1 // pred_check_branch
      %76 = sbr.rel (0) target = $region29
    $region28: #{discriminator_law_forward.1} parent=1 // pred_region
      _
    $region29: #{discriminator_law_forward.1} parent=1 // pred_fallthru
      _
    // Predicated region
    $region30: #{discriminator_law_forward.1} parent=1 // pred_check
      _
    $region31: #{discriminator_law_forward.1} parent=1 // pred_check_branch
      %78 = sbr.rel (0) target = $region33
    $region32: #{discriminator_law_forward.1} parent=1 // pred_region
      %80 = vsyncadd [#allocation9], 0
      %s81 = sshll.u32 %s7, 4
      %s82 = int_to_ptr.hbm [resolvable:$true] %s81
      %s83 = sshll.u32 [#allocation10], 4
      %s84 = int_to_ptr.vmem [resolvable:$true] %s83
      %89 = dma.hbm_to_vmem [thread:$0]  %s82, 2048, %s84, [#allocation9], 128, 128, 8
    $region33: #{discriminator_law_forward.1} parent=1 // pred_fallthru
      _
    // Predicated region
    $region34: #{discriminator_law_forward.1} parent=1 // pred_check
      _
    $region35: #{discriminator_law_forward.1} parent=1 // pred_check_branch
      %91 = sbr.rel (0) target = $region37
    $region36: #{discriminator_law_forward.1} parent=1 // pred_region
      _
    $region37: #{discriminator_law_forward.1} parent=1 // pred_fallthru
      _
    // Predicated region
    $region38: #{discriminator_law_forward.1} parent=1 // pred_check
      _
    $region39: #{discriminator_law_forward.1} parent=1 // pred_check_branch
      %93 = sbr.rel (0) target = $region41
    $region40: #{discriminator_law_forward.1} parent=1 // pred_region
      _
    $region41: #{discriminator_law_forward.1} parent=1 // pred_fallthru
      _
    // Predicated region
    $region42: #{discriminator_law_forward.1} parent=1 // pred_check
      _
    $region43: #{discriminator_law_forward.1} parent=1 // pred_check_branch
      %95 = sbr.rel (0) target = $region45
    $region44: #{discriminator_law_forward.1} parent=1 // pred_region
      _
    $region45: #{discriminator_law_forward.1} parent=1 // pred_fallthru
      _
    // Predicated region
    $region46: #{discriminator_law_forward.1} parent=1 // pred_check
      _
    $region47: #{discriminator_law_forward.1} parent=1 // pred_check_branch
      %97 = sbr.rel (0) target = $region49
    $region48: #{discriminator_law_forward.1} parent=1 // pred_region
      %99 = dma.done [#allocation4], 128
    $region49: #{discriminator_law_forward.1} parent=1 // pred_fallthru
      _
    // Predicated region
    $region50: #{discriminator_law_forward.1} parent=1 // pred_check
      _
    $region51: #{discriminator_law_forward.1} parent=1 // pred_check_branch
      %101 = sbr.rel (0) target = $region53
    $region52: #{discriminator_law_forward.1} parent=1 // pred_region
      %103 = dma.done [#allocation6], 2048
    $region53: #{discriminator_law_forward.1} parent=1 // pred_fallthru
      _
    // Predicated region
    $region54: #{discriminator_law_forward.1} parent=1 // pred_check
      _
    $region55: #{discriminator_law_forward.1} parent=1 // pred_check_branch
      %105 = sbr.rel (0) target = $region57
    $region56: #{discriminator_law_forward.1} parent=1 // pred_region
      %107 = dma.done [#allocation6], 4096
    $region57: #{discriminator_law_forward.1} parent=1 // pred_fallthru
      _
    // Predicated region
    $region58: #{discriminator_law_forward.1} parent=1 // pred_check
      _
    $region59: #{discriminator_law_forward.1} parent=1 // pred_check_branch
      %109 = sbr.rel (0) target = $region61
    $region60: #{discriminator_law_forward.1} parent=1 // pred_region
      %111 = dma.done [#allocation9], 2048
    $region61: #{discriminator_law_forward.1} parent=1 // pred_fallthru
      _
    // Predicated region
    $region62: #{discriminator_law_forward.1} parent=1 // pred_check
      _
    $region63: #{discriminator_law_forward.1} parent=1 // pred_check_branch
      %113 = sbr.rel (0) target = $region65
    $region64: #{discriminator_law_forward.1} parent=1 // pred_region
      %115 = dma.done [#allocation9], 2048
    $region65: #{discriminator_law_forward.1} parent=1 // pred_fallthru
      _
    %v116 = vld [vmem:[#allocation3] sm:$0xff]
    %v117 = vld [vmem:[#allocation5] sm:$0xff]
    %v118 = vld [vmem:[#allocation5 + $0x8] sm:$0xff]
    %v119 = vld [vmem:[#allocation5 + $0x10] sm:$0xff]
    %v120 = vld [vmem:[#allocation5 + $0x18] sm:$0xff]
    %v121 = vld [vmem:[#allocation5 + $0x20] sm:$0xff]
    %v122 = vld [vmem:[#allocation5 + $0x28] sm:$0xff]
    %v123 = vld [vmem:[#allocation5 + $0x30] sm:$0xff]
    %v124 = vld [vmem:[#allocation5 + $0x38] sm:$0xff]
    %v125 = vld [vmem:[#allocation5 + $0x40] sm:$0xff]
    %v126 = vld [vmem:[#allocation5 + $0x48] sm:$0xff]
    %v127 = vld [vmem:[#allocation5 + $0x50] sm:$0xff]
    %v128 = vld [vmem:[#allocation5 + $0x58] sm:$0xff]
    %v129 = vld [vmem:[#allocation5 + $0x60] sm:$0xff]
    %v130 = vld [vmem:[#allocation5 + $0x68] sm:$0xff]
    %v131 = vld [vmem:[#allocation5 + $0x70] sm:$0xff]
    %v132 = vld [vmem:[#allocation5 + $0x78] sm:$0xff]
    %v133 = vld [vmem:[%s2] sm:$0x3]
    %v135 = vperm.slane %v133, 0
    %v136 = vperm.slane %v133, 1
    %vm139 = vcmask 523264
    %v141 = vsel %vm139, %v116, 0
    %143 = vmatpush.msra.mxu0 0.0
    %144 = vmatpush.msra.mxu0 0.0
    %145 = vmatpush.msra.mxu0 0.0
    %146 = vmatpush.msra.mxu0 0.0
    %147 = vmatpush.msra.mxu0 0.0
    %148 = vmatpush.msra.mxu0 0.0
    %149 = vmatpush.msra.mxu0 0.0
    %150 = vmatpush.msra.mxu0 0.0
    %151 = vmatpush.msra.mxu0 %v131
    %152 = vmatpush.msra.mxu0 %v129
    %153 = vmatpush.msra.mxu0 %v127
    %154 = vmatpush.msra.mxu0 %v125
    %155 = vmatpush.msra.mxu0 %v123
    %156 = vmatpush.msra.mxu0 %v121
    %157 = vmatpush.msra.mxu0 %v119
    %158 = vmatpush.msra.mxu0 %v117
    %159 = vmatmul.f32.gmra.mxu0 %v141
    %v160 = vpop.f32.mrf.mxu0
    %v161 = vadd.f32 %v135, %v160
    %162 = vdwg.mxu0
    %163 = vmatpush.msra.mxu0 0.0
    %164 = vmatpush.msra.mxu0 0.0
    %165 = vmatpush.msra.mxu0 0.0
    %166 = vmatpush.msra.mxu0 0.0
    %167 = vmatpush.msra.mxu0 0.0
    %168 = vmatpush.msra.mxu0 0.0
    %169 = vmatpush.msra.mxu0 0.0
    %170 = vmatpush.msra.mxu0 0.0
    %171 = vmatpush.msra.mxu0 %v132
    %172 = vmatpush.msra.mxu0 %v130
    %173 = vmatpush.msra.mxu0 %v128
    %174 = vmatpush.msra.mxu0 %v126
    %175 = vmatpush.msra.mxu0 %v124
    %176 = vmatpush.msra.mxu0 %v122
    %177 = vmatpush.msra.mxu0 %v120
    %178 = vmatpush.msra.mxu0 %v118
    %179 = vmatmul.f32.gmra.mxu0 %v141
    %v180 = vpop.f32.mrf.mxu0
    %v181 = vadd.f32 %v136, %v180
    %182 = vdwg.mxu0
    %v183 = vmul.f32 %v161, 0.01
    %v184 = vmul.f32 %v181, 0.01
    %v185 = vmax.f32 %v161, %v183
    %v186 = vmax.f32 %v181, %v184
    %v187 = vld [vmem:[#allocation7] sm:$0xff]
    %v188 = vld [vmem:[#allocation7 + $0x8] sm:$0xff]
    %v189 = vld [vmem:[#allocation7 + $0x10] sm:$0xff]
    %v190 = vld [vmem:[#allocation7 + $0x18] sm:$0xff]
    %v191 = vld [vmem:[#allocation7 + $0x20] sm:$0xff]
    %v192 = vld [vmem:[#allocation7 + $0x28] sm:$0xff]
    %v193 = vld [vmem:[#allocation7 + $0x30] sm:$0xff]
    %v194 = vld [vmem:[#allocation7 + $0x38] sm:$0xff]
    %v195 = vld [vmem:[#allocation7 + $0x40] sm:$0xff]
    %v196 = vld [vmem:[#allocation7 + $0x48] sm:$0xff]
    %v197 = vld [vmem:[#allocation7 + $0x50] sm:$0xff]
    %v198 = vld [vmem:[#allocation7 + $0x58] sm:$0xff]
    %v199 = vld [vmem:[#allocation7 + $0x60] sm:$0xff]
    %v200 = vld [vmem:[#allocation7 + $0x68] sm:$0xff]
    %v201 = vld [vmem:[#allocation7 + $0x70] sm:$0xff]
    %v202 = vld [vmem:[#allocation7 + $0x78] sm:$0xff]
    %v203 = vld [vmem:[#allocation7 + $0x80] sm:$0xff]
    %v204 = vld [vmem:[#allocation7 + $0x88] sm:$0xff]
    %v205 = vld [vmem:[#allocation7 + $0x90] sm:$0xff]
    %v206 = vld [vmem:[#allocation7 + $0x98] sm:$0xff]
    %v207 = vld [vmem:[#allocation7 + $0xa0] sm:$0xff]
    %v208 = vld [vmem:[#allocation7 + $0xa8] sm:$0xff]
    %v209 = vld [vmem:[#allocation7 + $0xb0] sm:$0xff]
    %v210 = vld [vmem:[#allocation7 + $0xb8] sm:$0xff]
    %v211 = vld [vmem:[#allocation7 + $0xc0] sm:$0xff]
    %v212 = vld [vmem:[#allocation7 + $0xc8] sm:$0xff]
    %v213 = vld [vmem:[#allocation7 + $0xd0] sm:$0xff]
    %v214 = vld [vmem:[#allocation7 + $0xd8] sm:$0xff]
    %v215 = vld [vmem:[#allocation7 + $0xe0] sm:$0xff]
    %v216 = vld [vmem:[#allocation7 + $0xe8] sm:$0xff]
    %v217 = vld [vmem:[#allocation7 + $0xf0] sm:$0xff]
    %v218 = vld [vmem:[#allocation7 + $0xf8] sm:$0xff]
    %v219 = vld [vmem:[%s4] sm:$0x1]
    %v221 = vperm.slane %v219, 0
    %223 = vmatpush.msra.mxu0 %v202
    %224 = vmatpush.msra.mxu0 %v201
    %225 = vmatpush.msra.mxu0 %v200
    %226 = vmatpush.msra.mxu0 %v199
    %227 = vmatpush.msra.mxu0 %v198
    %228 = vmatpush.msra.mxu0 %v197
    %229 = vmatpush.msra.mxu0 %v196
    %230 = vmatpush.msra.mxu0 %v195
    %231 = vmatpush.msra.mxu0 %v194
    %232 = vmatpush.msra.mxu0 %v193
    %233 = vmatpush.msra.mxu0 %v192
    %234 = vmatpush.msra.mxu0 %v191
    %235 = vmatpush.msra.mxu0 %v190
    %236 = vmatpush.msra.mxu0 %v189
    %237 = vmatpush.msra.mxu0 %v188
    %238 = vmatpush.msra.mxu0 %v187
    %239 = vmatmul.f32.gmra.mxu0 %v185
    %v240 = vpop.f32.mrf.mxu0
    %v241 = vadd.f32 %v221, %v240
    %242 = vdwg.mxu0
    %243 = vmatpush.msra.mxu0 %v218
    %244 = vmatpush.msra.mxu0 %v217
    %245 = vmatpush.msra.mxu0 %v216
    %246 = vmatpush.msra.mxu0 %v215
    %247 = vmatpush.msra.mxu0 %v214
    %248 = vmatpush.msra.mxu0 %v213
    %249 = vmatpush.msra.mxu0 %v212
    %250 = vmatpush.msra.mxu0 %v211
    %251 = vmatpush.msra.mxu0 %v210
    %252 = vmatpush.msra.mxu0 %v209
    %253 = vmatpush.msra.mxu0 %v208
    %254 = vmatpush.msra.mxu0 %v207
    %255 = vmatpush.msra.mxu0 %v206
    %256 = vmatpush.msra.mxu0 %v205
    %257 = vmatpush.msra.mxu0 %v204
    %258 = vmatpush.msra.mxu0 %v203
    %259 = vmatmul.f32.gmra.mxu0 %v186
    %v260 = vpop.f32.mrf.mxu0
    %v261 = vadd.f32 %v241, %v260
    %262 = vdwg.mxu0
    %v263 = vmul.f32 %v261, 0.01
    %v264 = vmax.f32 %v261, %v263
    %v265 = vld [vmem:[#allocation8] sm:$0xff]
    %v266 = vld [vmem:[#allocation8 + $0x8] sm:$0xff]
    %v267 = vld [vmem:[#allocation8 + $0x10] sm:$0xff]
    %v268 = vld [vmem:[#allocation8 + $0x18] sm:$0xff]
    %v269 = vld [vmem:[#allocation8 + $0x20] sm:$0xff]
    %v270 = vld [vmem:[#allocation8 + $0x28] sm:$0xff]
    %v271 = vld [vmem:[#allocation8 + $0x30] sm:$0xff]
    %v272 = vld [vmem:[#allocation8 + $0x38] sm:$0xff]
    %v273 = vld [vmem:[#allocation8 + $0x40] sm:$0xff]
    %v274 = vld [vmem:[#allocation8 + $0x48] sm:$0xff]
    %v275 = vld [vmem:[#allocation8 + $0x50] sm:$0xff]
    %v276 = vld [vmem:[#allocation8 + $0x58] sm:$0xff]
    %v277 = vld [vmem:[#allocation8 + $0x60] sm:$0xff]
    %v278 = vld [vmem:[#allocation8 + $0x68] sm:$0xff]
    %v279 = vld [vmem:[#allocation8 + $0x70] sm:$0xff]
    %v280 = vld [vmem:[#allocation8 + $0x78] sm:$0xff]
    %v281 = vld [vmem:[%s6] sm:$0x1]
    %v283 = vperm.slane %v281, 0
    %285 = vmatpush.msra.mxu0 %v280
    %286 = vmatpush.msra.mxu0 %v279
    %287 = vmatpush.msra.mxu0 %v278
    %288 = vmatpush.msra.mxu0 %v277
    %289 = vmatpush.msra.mxu0 %v276
    %290 = vmatpush.msra.mxu0 %v275
    %291 = vmatpush.msra.mxu0 %v274
    %292 = vmatpush.msra.mxu0 %v273
    %293 = vmatpush.msra.mxu0 %v272
    %294 = vmatpush.msra.mxu0 %v271
    %295 = vmatpush.msra.mxu0 %v270
    %296 = vmatpush.msra.mxu0 %v269
    %297 = vmatpush.msra.mxu0 %v268
    %298 = vmatpush.msra.mxu0 %v267
    %299 = vmatpush.msra.mxu0 %v266
    %300 = vmatpush.msra.mxu0 %v265
    %301 = vmatmul.f32.gmra.mxu0 %v264
    %v302 = vpop.f32.mrf.mxu0
    %v303 = vadd.f32 %v283, %v302
    %304 = vdwg.mxu0
    %v305 = vmul.f32 %v303, 0.01
    %v306 = vmax.f32 %v303, %v305
    %v307 = vld [vmem:[#allocation10] sm:$0xff]
    %v308 = vld [vmem:[#allocation10 + $0x8] sm:$0xff]
    %v309 = vld [vmem:[#allocation10 + $0x10] sm:$0xff]
    %v310 = vld [vmem:[#allocation10 + $0x18] sm:$0xff]
    %v311 = vld [vmem:[#allocation10 + $0x20] sm:$0xff]
    %v312 = vld [vmem:[#allocation10 + $0x28] sm:$0xff]
    %v313 = vld [vmem:[#allocation10 + $0x30] sm:$0xff]
    %v314 = vld [vmem:[#allocation10 + $0x38] sm:$0xff]
    %v315 = vld [vmem:[#allocation10 + $0x40] sm:$0xff]
    %v316 = vld [vmem:[#allocation10 + $0x48] sm:$0xff]
    %v317 = vld [vmem:[#allocation10 + $0x50] sm:$0xff]
    %v318 = vld [vmem:[#allocation10 + $0x58] sm:$0xff]
    %v319 = vld [vmem:[#allocation10 + $0x60] sm:$0xff]
    %v320 = vld [vmem:[#allocation10 + $0x68] sm:$0xff]
    %v321 = vld [vmem:[#allocation10 + $0x70] sm:$0xff]
    %v322 = vld [vmem:[#allocation10 + $0x78] sm:$0xff]
    %v323 = vld [vmem:[%s8] sm:$0x1]
    %v325 = vperm.slane %v323, 0
    %327 = vmatpush.msra.mxu0 %v322
    %328 = vmatpush.msra.mxu0 %v321
    %329 = vmatpush.msra.mxu0 %v320
    %330 = vmatpush.msra.mxu0 %v319
    %331 = vmatpush.msra.mxu0 %v318
    %332 = vmatpush.msra.mxu0 %v317
    %333 = vmatpush.msra.mxu0 %v316
    %334 = vmatpush.msra.mxu0 %v315
    %335 = vmatpush.msra.mxu0 %v314
    %336 = vmatpush.msra.mxu0 %v313
    %337 = vmatpush.msra.mxu0 %v312
    %338 = vmatpush.msra.mxu0 %v311
    %339 = vmatpush.msra.mxu0 %v310
    %340 = vmatpush.msra.mxu0 %v309
    %341 = vmatpush.msra.mxu0 %v308
    %342 = vmatpush.msra.mxu0 %v307
    %343 = vmatmul.f32.gmra.mxu0 %v306
    %v344 = vpop.f32.mrf.mxu0
    %v345 = vadd.f32 %v325, %v344
    %346 = vdwg.mxu0
    %v347 = vmul.f32 %v345, 0.01
    %v348 = vmax.f32 %v345, %v347
    %v349 = vld [vmem:[%s9] sm:$0x1]
    %v351 = vperm.slane %v349, 0
    %v353 = vmul.f32 %v348, %v351
    %354 = vadd.xlane.f32.xlu0 %v353
    %v355 = vpop.xlane.xlu0 %354
    %v356 = vld [vmem:[#allocation2] sm:$0x1]
    %v358 = vperm.slane %v356, 0
    %v360 = vadd.f32 %v355, %v358
    %vm361 = vcmask 7168
    %362 = vst.msk [vmem:[%s11] sm:$0xff] %vm361, %v360
    // Predicated region
    $region66: #{discriminator_law_forward.1} parent=1 // pred_check
      _
    $region67: #{discriminator_law_forward.1} parent=1 // pred_check_branch
      %364 = sbr.rel (0) target = $region69
    $region68: #{discriminator_law_forward.1} parent=1 // pred_region
      _
    $region69: #{discriminator_law_forward.1} parent=1 // pred_fallthru
      _
    // Predicated region
    $region70: #{discriminator_law_forward.1} parent=1 // pred_check
      _
    $region71: #{discriminator_law_forward.1} parent=1 // pred_check_branch
      %366 = sbr.rel (0) target = $region73
    $region72: #{discriminator_law_forward.1} parent=1 // pred_region
      _
    $region73: #{discriminator_law_forward.1} parent=1 // pred_fallthru
      _
    %367 = vsyncpa [#allocation4], 1
    %368 = vsyncpa [#allocation6], 1
    %369 = vsyncpa [#allocation9], 1

</llo_original>
